<compile_context>
chip_gen: v5e
topology: v5e:2x2
jax: 0.10.0
libtpu: 0.0.40
codegen_flags: <defaults>
</compile_context>

<pallas_src>
import functools

import jax
import jax.numpy as jnp
from jax.experimental import pallas as pl
from jax.experimental.pallas import tpu as pltpu


def _round_up(x: int, m: int) -> int:
    return ((x + m - 1) // m) * m


def _ensemble_fc_kernel(x_ref, w_ref, b_ref, o_ref, acc_ref, *, compute_dtype):
    # x_ref: (be, tm, tk)  w_ref: (be, tk, tn)  b_ref: (be, 1, tn)
    # o_ref: (be, tm, tn)  acc_ref: (be, tm, tn) f32
    k = pl.program_id(3)

    @pl.when(k == 0)
    def _init():
        acc_ref[...] = jnp.zeros_like(acc_ref)

    x = x_ref[...]
    w = w_ref[...]
    if compute_dtype is not None:
        x = x.astype(compute_dtype)
        w = w.astype(compute_dtype)

    # Batched matmul over the small ensemble-block axis; accumulates in f32.
    acc_ref[...] += jnp.einsum(
        "ebk,eko->ebo", x, w, preferred_element_type=jnp.float32
    )

    @pl.when(k == pl.num_programs(3) - 1)
    def _finalize():
        o_ref[...] = (
            acc_ref[...] + b_ref[...].astype(jnp.float32)
        ).astype(o_ref.dtype)


def ensemble_fc(x, weight, bias, *, compute_dtype=None,
                vmem_budget_bytes=12 * 1024 * 1024):
    """x: (E, B, IN), weight: (E, IN, OUT), bias: (E, OUT) -> (E, B, OUT)."""
    E, B, IN = x.shape
    _, _, OUT = weight.shape
    assert weight.shape == (E, IN, OUT)
    assert bias.shape == (E, OUT)

    # ---- Tile sizes (lane-dense OUT, 8-aligned B, 128-aligned K). ----
    tm = 256 if B >= 256 else _round_up(B, 8)
    tn = 256 if OUT >= 256 else _round_up(OUT, 128)
    tk = 512 if IN >= 512 else _round_up(IN, 128)

    B_pad = _round_up(B, tm)
    OUT_pad = _round_up(OUT, tn)
    IN_pad = _round_up(IN, tk)

    # ---- Zero-pad (safe: zero rows/cols contribute nothing; sliced off). ----
    x_p = x
    if (B_pad, IN_pad) != (B, IN):
        x_p = jnp.pad(x, ((0, 0), (0, B_pad - B), (0, IN_pad - IN)))
    w_p = weight
    if (IN_pad, OUT_pad) != (IN, OUT):
        w_p = jnp.pad(weight, ((0, 0), (0, IN_pad - IN), (0, OUT_pad - OUT)))
    b_p = bias
    if OUT_pad != OUT:
        b_p = jnp.pad(bias, ((0, 0), (0, OUT_pad - OUT)))
    b_p = b_p.reshape(E, 1, OUT_pad)

    # ---- Pick how many ensemble members per grid step from a VMEM budget. ----
    itemsize = jnp.dtype(x.dtype).itemsize
    per_member = (
        2 * (tm * tk + tk * tn + tn + tm * tn) * itemsize  # double-buffered I/O
        + tm * tn * 4                                      # f32 accumulator
    )
    be = max(1, min(E, vmem_budget_bytes // max(per_member, 1)))
    while E % be:
        be -= 1

    vmem_limit = int(min(48 * 1024 * 1024,
                         max(16 * 1024 * 1024, 2 * be * per_member)))

    grid = (E // be, B_pad // tm, OUT_pad // tn, IN_pad // tk)

    kernel = functools.partial(_ensemble_fc_kernel, compute_dtype=compute_dtype)

    out = pl.pallas_call(
        kernel,
        out_shape=jax.ShapeDtypeStruct((E, B_pad, OUT_pad), x.dtype),
        grid_spec=pltpu.PrefetchScalarGridSpec(
            num_scalar_prefetch=0,
            grid=grid,
            in_specs=[
                pl.BlockSpec((be, tm, tk), lambda e, i, j, k: (e, i, k)),
                pl.BlockSpec((be, tk, tn), lambda e, i, j, k: (e, k, j)),
                pl.BlockSpec((be, 1, tn), lambda e, i, j, k: (e, 0, j)),
            ],
            out_specs=pl.BlockSpec((be, tm, tn), lambda e, i, j, k: (e, i, j)),
            scratch_shapes=[pltpu.VMEM((be, tm, tn), jnp.float32)],
        ),
        compiler_params=pltpu.CompilerParams(
            dimension_semantics=("parallel", "parallel", "parallel", "arbitrary"),
            vmem_limit_bytes=vmem_limit,
        ),
    )(x_p, w_p, b_p)

    return out[:, :B, :OUT]


if __name__ == "__main__":
    # Small, module-consistent shapes: ensemble_size=4, batch=8, in=32, out=32.
    E, B, IN, OUT = 4, 8, 32, 32

    key = jax.random.PRNGKey(0)
    kx, kw, kb = jax.random.split(key, 3)

    x = jax.random.normal(kx, (E, B, IN), dtype=jnp.float32)
    # reset_parameters() is a no-op in the original module, so any
    # deterministic synthetic init is fine.
    weight = jax.random.normal(kw, (E, IN, OUT), dtype=jnp.float32) * 0.1
    bias = jax.random.normal(kb, (E, OUT), dtype=jnp.float32) * 0.1

    ref = jnp.einsum("ebi,eio->ebo", x, weight) + bias[:, None, :]

    # Full-precision path (exact semantics of the PyTorch module).
    out_f32 = jax.block_until_ready(ensemble_fc(x, weight, bias))
    assert out_f32.shape == (E, B, OUT)
    assert jnp.allclose(out_f32, ref, atol=1e-5, rtol=1e-5)

    # bf16 MXU path (f32 accumulation) — looser tolerance.
    out_bf16 = jax.block_until_ready(
        ensemble_fc(x, weight, bias, compute_dtype=jnp.bfloat16)
    )
    assert out_bf16.shape == (E, B, OUT)
    assert jnp.allclose(out_bf16, ref, atol=1e-1, rtol=1e-1)

    print("KERNEL_OK")
</pallas_src>

<mosaic_0001>
module attributes {stable_mosaic.version = 11 : i64} {
  func.func @_ensemble_fc_kernel(%arg0: i32, %arg1: i32, %arg2: i32, %arg3: i32, %arg4: memref<4x8x128xf32, #tpu.memory_space<vmem>>, %arg5: memref<4x128x128xf32, #tpu.memory_space<vmem>>, %arg6: memref<4x1x128xf32, #tpu.memory_space<vmem>>, %arg7: memref<4x8x128xf32, #tpu.memory_space<vmem>>, %arg8: memref<4x8x128xf32, #tpu.memory_space<vmem>>) attributes {dimension_semantics = [#tpu.dimension_semantics<parallel>, #tpu.dimension_semantics<parallel>, #tpu.dimension_semantics<parallel>, #tpu.dimension_semantics<arbitrary>], iteration_bounds = array<i64: 1, 1, 1, 1>, scalar_prefetch = 0 : i64, scratch_operands = 1 : i64, tpu.core_type = #tpu.core_type<tc>, window_params = [{transform_indices = @transform_0, window_bounds = array<i64: 4, 8, 128>}, {transform_indices = @transform_1, window_bounds = array<i64: 4, 128, 128>}, {transform_indices = @transform_2, window_bounds = array<i64: 4, 1, 128>}, {transform_indices = @transform_3, window_bounds = array<i64: 4, 8, 128>}]} {
    %c0_i32 = arith.constant 0 : i32
    %0 = arith.cmpi eq, %arg3, %c0_i32 : i32
    %1 = arith.extui %0 : i1 to i32
    %c0_i32_0 = arith.constant 0 : i32
    %2 = arith.cmpi ne, %1, %c0_i32_0 : i32
    scf.if %2 {
      %cst_14 = arith.constant 0.000000e+00 : f32
      %12 = vector.broadcast %cst_14 : f32 to vector<4x8x128xf32>
      %c0_15 = arith.constant 0 : index
      %c0_16 = arith.constant 0 : index
      %c0_17 = arith.constant 0 : index
      %13 = vector.load %arg8[%c0_15, %c0_16, %c0_17] : memref<4x8x128xf32, #tpu.memory_space<vmem>>, vector<4x8x128xf32>
      tpu.vector_store %arg8[%c0_15, %c0_16, %c0_17], %12 {strides = array<i32>} : memref<4x8x128xf32, #tpu.memory_space<vmem>>, vector<4x8x128xf32>,
    } else {
    }
    %c0 = arith.constant 0 : index
    %c0_1 = arith.constant 0 : index
    %c0_2 = arith.constant 0 : index
    %3 = vector.load %arg4[%c0, %c0_1, %c0_2] : memref<4x8x128xf32, #tpu.memory_space<vmem>>, vector<4x8x128xf32>
    %c0_3 = arith.constant 0 : index
    %c0_4 = arith.constant 0 : index
    %c0_5 = arith.constant 0 : index
    %4 = vector.load %arg5[%c0_3, %c0_4, %c0_5] : memref<4x128x128xf32, #tpu.memory_space<vmem>>, vector<4x128x128xf32>
    %c0_6 = arith.constant 0 : index
    %c0_7 = arith.constant 0 : index
    %c0_8 = arith.constant 0 : index
    %5 = vector.load %arg8[%c0_6, %c0_7, %c0_8] : memref<4x8x128xf32, #tpu.memory_space<vmem>>, vector<4x8x128xf32>
    "tpu.trace_start"() <{level = 10 : i32, message = "ebk,eko->ebo"}> : () -> ()
    %cst = arith.constant dense<0.000000e+00> : vector<4x8x128xf32>
    %6 = tpu.matmul %3, %4, %cst {dimension_numbers = #tpu.dot_dimension_numbers<[2], [1], [1], [2], [0, 0, 0, 1, 1, 2], [0], [0]>} : vector<4x8x128xf32>, vector<4x128x128xf32>, vector<4x8x128xf32> -> vector<4x8x128xf32>
    "tpu.trace_stop"() : () -> ()
    %7 = arith.addf %5, %6 : vector<4x8x128xf32>
    %c0_9 = arith.constant 0 : index
    %c0_10 = arith.constant 0 : index
    %c0_11 = arith.constant 0 : index
    %8 = vector.load %arg8[%c0_9, %c0_10, %c0_11] : memref<4x8x128xf32, #tpu.memory_space<vmem>>, vector<4x8x128xf32>
    tpu.vector_store %arg8[%c0_9, %c0_10, %c0_11], %7 {strides = array<i32>} : memref<4x8x128xf32, #tpu.memory_space<vmem>>, vector<4x8x128xf32>,
    %c0_i32_12 = arith.constant 0 : i32
    %9 = arith.cmpi eq, %arg3, %c0_i32_12 : i32
    %10 = arith.extui %9 : i1 to i32
    %c0_i32_13 = arith.constant 0 : i32
    %11 = arith.cmpi ne, %10, %c0_i32_13 : i32
    scf.if %11 {
      %c0_14 = arith.constant 0 : index
      %c0_15 = arith.constant 0 : index
      %c0_16 = arith.constant 0 : index
      %12 = vector.load %arg8[%c0_14, %c0_15, %c0_16] : memref<4x8x128xf32, #tpu.memory_space<vmem>>, vector<4x8x128xf32>
      %c0_17 = arith.constant 0 : index
      %c0_18 = arith.constant 0 : index
      %c0_19 = arith.constant 0 : index
      %13 = vector.load %arg6[%c0_17, %c0_18, %c0_19] : memref<4x1x128xf32, #tpu.memory_space<vmem>>, vector<4x1x128xf32>
      %14 = vector.broadcast %13 : vector<4x1x128xf32> to vector<4x8x128xf32>
      %15 = arith.addf %12, %14 : vector<4x8x128xf32>
      %c0_20 = arith.constant 0 : index
      %c0_21 = arith.constant 0 : index
      %c0_22 = arith.constant 0 : index
      %16 = vector.load %arg7[%c0_20, %c0_21, %c0_22] : memref<4x8x128xf32, #tpu.memory_space<vmem>>, vector<4x8x128xf32>
      tpu.vector_store %arg7[%c0_20, %c0_21, %c0_22], %15 {strides = array<i32>} : memref<4x8x128xf32, #tpu.memory_space<vmem>>, vector<4x8x128xf32>,
    } else {
    }
    return
  }
  func.func @transform_0(%arg0: i32, %arg1: i32, %arg2: i32, %arg3: i32) -> (i32, i32, i32) {
    %c0_i32 = arith.constant 0 : i32
    return %arg0, %arg1, %arg3 : i32, i32, i32
  }
  func.func @transform_1(%arg0: i32, %arg1: i32, %arg2: i32, %arg3: i32) -> (i32, i32, i32) {
    %c0_i32 = arith.constant 0 : i32
    return %arg0, %arg3, %arg2 : i32, i32, i32
  }
  func.func @transform_2(%arg0: i32, %arg1: i32, %arg2: i32, %arg3: i32) -> (i32, i32, i32) {
    %c0_i32 = arith.constant 0 : i32
    %c0_i32_0 = arith.constant 0 : i32
    return %arg0, %c0_i32, %arg2 : i32, i32, i32
  }
  func.func @transform_3(%arg0: i32, %arg1: i32, %arg2: i32, %arg3: i32) -> (i32, i32, i32) {
    %c0_i32 = arith.constant 0 : i32
    return %arg0, %arg1, %arg2 : i32, i32, i32
  }
}

</mosaic_0001>

<llo_original>
// kernel: tpu_custom_call.1
$region0: #{tpu_custom_call.1}
  #allocation0 [shape = 'u32[]', space=smem, size = 0x4, offset = 0x4, fixed_abs, tag = 'smem constant byte address 0x4 - core index']
  #allocation1 [shape = 'u32[72,128]{1,0:T(1,128)}', space=vmem, size = 0x9000, scoped, tag = 'internal scratch']
  #allocation2 [shape = 'f32[4,8,128]{2,1,0:T(8,128)}', space=vmem, size = 0x4000, scoped, tag = 'scratch operand']
  %s0 = inlined_call_operand.hbm [shape: f32[4,8,128], index: 0, kind: input, shape index: {}]
  %s1 = inlined_call_operand.hbm [shape: f32[4,128,128], index: 1, kind: input, shape index: {}]
  %s2 = inlined_call_operand.hbm [shape: f32[4,1,128], index: 2, kind: input, shape index: {}]
  %s3 = inlined_call_operand.hbm [shape: f32[4,8,128], index: 3, kind: output, shape index: {}]
  %s4 = sld [smem:[#allocation0]]
  $region42: #{tpu_custom_call.1} parent=0
    _
  %s6 = ssub.s32 1, %s4
  %s7 = scalar_select 0, %s6, %s4
  $region1: #{tpu_custom_call.1} parent=0
    #allocation3 [shape = 'u8[16384]{0}', space=vmem, size = 0x4000, scoped, tag = 'input window, operand 0, single buffered']
    #allocation4 [shape = 's32[1]{0}', space=sflag, size = 0x4, scoped, tag = 'scoped memory for tpu_custom_call.1']
    #allocation5 [shape = 's32[1]{0}', space=sflag, size = 0x4, scoped, tag = 'scoped memory for tpu_custom_call.1']
    #allocation6 [shape = 'u8[262144]{0}', space=vmem, size = 0x40000, scoped, tag = 'input window, operand 1, single buffered']
    #allocation7 [shape = 's32[1]{0}', space=sflag, size = 0x4, scoped, tag = 'scoped memory for tpu_custom_call.1']
    #allocation8 [shape = 'u8[2048]{0}', space=vmem, size = 0x800, scoped, tag = 'input window, operand 2, single buffered']
    #allocation9 [shape = 'u8[16384]{0}', space=vmem, size = 0x4000, scoped, tag = 'output window, operand 0, single buffered']
    %8 = vsyncpa [#allocation4], 0
    %9 = vsyncpa [#allocation7], 0
    %10 = vsyncpa [#allocation5], 0
    // Predicated region
    $region2: #{tpu_custom_call.1} parent=1 // pred_check
      _
    $region3: #{tpu_custom_call.1} parent=1 // pred_check_branch
      %12 = sbr.rel (0) target = $region5
    $region4: #{tpu_custom_call.1} parent=1 // pred_region
      %14 = vsyncadd [#allocation4], 0
      %s15 = sshll.u32 %s0, 4
      %s16 = int_to_ptr.hbm [resolvable:$true] %s15
      %s17 = sshll.u32 [#allocation3], 4
      %s18 = int_to_ptr.vmem [resolvable:$true] %s17
      %23 = dma.hbm_to_vmem [thread:$0]  %s16, 512, %s18, [#allocation4], 128, 128, 8
    $region5: #{tpu_custom_call.1} parent=1 // pred_fallthru
      _
    // Predicated region
    $region6: #{tpu_custom_call.1} parent=1 // pred_check
      _
    $region7: #{tpu_custom_call.1} parent=1 // pred_check_branch
      %25 = sbr.rel (0) target = $region9
    $region8: #{tpu_custom_call.1} parent=1 // pred_region
      %27 = vsyncadd [#allocation7], 0
      %s28 = sshll.u32 %s1, 4
      %s29 = int_to_ptr.hbm [resolvable:$true] %s28
      %s30 = sshll.u32 [#allocation6], 4
      %s31 = int_to_ptr.vmem [resolvable:$true] %s30
      %36 = dma.hbm_to_vmem [thread:$0]  %s29, 8192, %s31, [#allocation7], 128, 128, 8
    $region9: #{tpu_custom_call.1} parent=1 // pred_fallthru
      _
    // Predicated region
    $region10: #{tpu_custom_call.1} parent=1 // pred_check
      _
    $region11: #{tpu_custom_call.1} parent=1 // pred_check_branch
      %38 = sbr.rel (0) target = $region13
    $region12: #{tpu_custom_call.1} parent=1 // pred_region
      %40 = vsyncadd [#allocation7], 0
      %s41 = sshll.u32 %s2, 4
      %s42 = int_to_ptr.hbm [resolvable:$true] %s41
      %s43 = sshll.u32 [#allocation8], 4
      %s44 = int_to_ptr.vmem [resolvable:$true] %s43
      %49 = dma.hbm_to_vmem [thread:$0]  %s42, 64, %s44, [#allocation7], 16, 16, 1
    $region13: #{tpu_custom_call.1} parent=1 // pred_fallthru
      _
    // Predicated region
    $region14: #{tpu_custom_call.1} parent=1 // pred_check
      _
    $region15: #{tpu_custom_call.1} parent=1 // pred_check_branch
      %51 = sbr.rel (0) target = $region17
    $region16: #{tpu_custom_call.1} parent=1 // pred_region
      %53 = dma.done [#allocation4], 512
    $region17: #{tpu_custom_call.1} parent=1 // pred_fallthru
      _
    // Predicated region
    $region18: #{tpu_custom_call.1} parent=1 // pred_check
      _
    $region19: #{tpu_custom_call.1} parent=1 // pred_check_branch
      %55 = sbr.rel (0) target = $region21
    $region20: #{tpu_custom_call.1} parent=1 // pred_region
      %57 = dma.done [#allocation7], 8192
    $region21: #{tpu_custom_call.1} parent=1 // pred_fallthru
      _
    // Predicated region
    $region22: #{tpu_custom_call.1} parent=1 // pred_check
      _
    $region23: #{tpu_custom_call.1} parent=1 // pred_check_branch
      %59 = sbr.rel (0) target = $region25
    $region24: #{tpu_custom_call.1} parent=1 // pred_region
      %61 = dma.done [#allocation7], 64
    $region25: #{tpu_custom_call.1} parent=1 // pred_fallthru
      _
    %p62 = scmp.eq.s32.totalorder 0, 0
    // Predicated region
    $region26: #{tpu_custom_call.1} parent=1 // pred_check
      %p63 = pneg %p62
    $region27: #{tpu_custom_call.1} parent=1 // pred_check_branch
      %65 = sbr.rel (%p63) target = $region29
    $region28: #{tpu_custom_call.1} parent=1 // pred_region
      %66 = vst [vmem:[#allocation2] sm:$0xff] 0.0
      %67 = vst [vmem:[#allocation2 + $0x8] sm:$0xff] 0.0
      %68 = vst [vmem:[#allocation2 + $0x10] sm:$0xff] 0.0
      %69 = vst [vmem:[#allocation2 + $0x18] sm:$0xff] 0.0
    $region29: #{tpu_custom_call.1} parent=1 // pred_fallthru
      _
    %v70 = vld [vmem:[#allocation3] sm:$0xff]
    %v71 = vld [vmem:[#allocation3 + $0x8] sm:$0xff]
    %v72 = vld [vmem:[#allocation3 + $0x10] sm:$0xff]
    %v73 = vld [vmem:[#allocation3 + $0x18] sm:$0xff]
    %v74 = vld [vmem:[#allocation6] sm:$0xff]
    %v75 = vld [vmem:[#allocation6 + $0x8] sm:$0xff]
    %v76 = vld [vmem:[#allocation6 + $0x10] sm:$0xff]
    %v77 = vld [vmem:[#allocation6 + $0x18] sm:$0xff]
    %v78 = vld [vmem:[#allocation6 + $0x20] sm:$0xff]
    %v79 = vld [vmem:[#allocation6 + $0x28] sm:$0xff]
    %v80 = vld [vmem:[#allocation6 + $0x30] sm:$0xff]
    %v81 = vld [vmem:[#allocation6 + $0x38] sm:$0xff]
    %v82 = vld [vmem:[#allocation6 + $0x40] sm:$0xff]
    %v83 = vld [vmem:[#allocation6 + $0x48] sm:$0xff]
    %v84 = vld [vmem:[#allocation6 + $0x50] sm:$0xff]
    %v85 = vld [vmem:[#allocation6 + $0x58] sm:$0xff]
    %v86 = vld [vmem:[#allocation6 + $0x60] sm:$0xff]
    %v87 = vld [vmem:[#allocation6 + $0x68] sm:$0xff]
    %v88 = vld [vmem:[#allocation6 + $0x70] sm:$0xff]
    %v89 = vld [vmem:[#allocation6 + $0x78] sm:$0xff]
    %v90 = vld [vmem:[#allocation6 + $0x80] sm:$0xff]
    %v91 = vld [vmem:[#allocation6 + $0x88] sm:$0xff]
    %v92 = vld [vmem:[#allocation6 + $0x90] sm:$0xff]
    %v93 = vld [vmem:[#allocation6 + $0x98] sm:$0xff]
    %v94 = vld [vmem:[#allocation6 + $0xa0] sm:$0xff]
    %v95 = vld [vmem:[#allocation6 + $0xa8] sm:$0xff]
    %v96 = vld [vmem:[#allocation6 + $0xb0] sm:$0xff]
    %v97 = vld [vmem:[#allocation6 + $0xb8] sm:$0xff]
    %v98 = vld [vmem:[#allocation6 + $0xc0] sm:$0xff]
    %v99 = vld [vmem:[#allocation6 + $0xc8] sm:$0xff]
    %v100 = vld [vmem:[#allocation6 + $0xd0] sm:$0xff]
    %v101 = vld [vmem:[#allocation6 + $0xd8] sm:$0xff]
    %v102 = vld [vmem:[#allocation6 + $0xe0] sm:$0xff]
    %v103 = vld [vmem:[#allocation6 + $0xe8] sm:$0xff]
    %v104 = vld [vmem:[#allocation6 + $0xf0] sm:$0xff]
    %v105 = vld [vmem:[#allocation6 + $0xf8] sm:$0xff]
    %v106 = vld [vmem:[#allocation6 + $0x100] sm:$0xff]
    %v107 = vld [vmem:[#allocation6 + $0x108] sm:$0xff]
    %v108 = vld [vmem:[#allocation6 + $0x110] sm:$0xff]
    %v109 = vld [vmem:[#allocation6 + $0x118] sm:$0xff]
    %v110 = vld [vmem:[#allocation6 + $0x120] sm:$0xff]
    %v111 = vld [vmem:[#allocation6 + $0x128] sm:$0xff]
    %v112 = vld [vmem:[#allocation6 + $0x130] sm:$0xff]
    %v113 = vld [vmem:[#allocation6 + $0x138] sm:$0xff]
    %v114 = vld [vmem:[#allocation6 + $0x140] sm:$0xff]
    %v115 = vld [vmem:[#allocation6 + $0x148] sm:$0xff]
    %v116 = vld [vmem:[#allocation6 + $0x150] sm:$0xff]
    %v117 = vld [vmem:[#allocation6 + $0x158] sm:$0xff]
    %v118 = vld [vmem:[#allocation6 + $0x160] sm:$0xff]
    %v119 = vld [vmem:[#allocation6 + $0x168] sm:$0xff]
    %v120 = vld [vmem:[#allocation6 + $0x170] sm:$0xff]
    %v121 = vld [vmem:[#allocation6 + $0x178] sm:$0xff]
    %v122 = vld [vmem:[#allocation6 + $0x180] sm:$0xff]
    %v123 = vld [vmem:[#allocation6 + $0x188] sm:$0xff]
    %v124 = vld [vmem:[#allocation6 + $0x190] sm:$0xff]
    %v125 = vld [vmem:[#allocation6 + $0x198] sm:$0xff]
    %v126 = vld [vmem:[#allocation6 + $0x1a0] sm:$0xff]
    %v127 = vld [vmem:[#allocation6 + $0x1a8] sm:$0xff]
    %v128 = vld [vmem:[#allocation6 + $0x1b0] sm:$0xff]
    %v129 = vld [vmem:[#allocation6 + $0x1b8] sm:$0xff]
    %v130 = vld [vmem:[#allocation6 + $0x1c0] sm:$0xff]
    %v131 = vld [vmem:[#allocation6 + $0x1c8] sm:$0xff]
    %v132 = vld [vmem:[#allocation6 + $0x1d0] sm:$0xff]
    %v133 = vld [vmem:[#allocation6 + $0x1d8] sm:$0xff]
    %v134 = vld [vmem:[#allocation6 + $0x1e0] sm:$0xff]
    %v135 = vld [vmem:[#allocation6 + $0x1e8] sm:$0xff]
    %v136 = vld [vmem:[#allocation6 + $0x1f0] sm:$0xff]
    %v137 = vld [vmem:[#allocation6 + $0x1f8] sm:$0xff]
    %v138 = vld [vmem:[#allocation2] sm:$0xff]
    %v139 = vld [vmem:[#allocation2 + $0x8] sm:$0xff]
    %v140 = vld [vmem:[#allocation2 + $0x10] sm:$0xff]
    %v141 = vld [vmem:[#allocation2 + $0x18] sm:$0xff]
    %142 = vmatpush.msra.mxu0 %v89
    %143 = vmatpush.msra.mxu0 %v88
    %144 = vmatpush.msra.mxu0 %v87
    %145 = vmatpush.msra.mxu0 %v86
    %146 = vmatpush.msra.mxu0 %v85
    %147 = vmatpush.msra.mxu0 %v84
    %148 = vmatpush.msra.mxu0 %v83
    %149 = vmatpush.msra.mxu0 %v82
    %150 = vmatpush.msra.mxu0 %v81
    %151 = vmatpush.msra.mxu0 %v80
    %152 = vmatpush.msra.mxu0 %v79
    %153 = vmatpush.msra.mxu0 %v78
    %154 = vmatpush.msra.mxu0 %v77
    %155 = vmatpush.msra.mxu0 %v76
    %156 = vmatpush.msra.mxu0 %v75
    %157 = vmatpush.msra.mxu0 %v74
    %158 = vmatmul.f32.gmra.mxu0 %v70
    %v159 = vpop.f32.mrf.mxu0
    %v160 = vadd.f32 0.0, %v159
    %161 = vdwg.mxu0
    %162 = vmatpush.msra.mxu0 %v105
    %163 = vmatpush.msra.mxu0 %v104
    %164 = vmatpush.msra.mxu0 %v103
    %165 = vmatpush.msra.mxu0 %v102
    %166 = vmatpush.msra.mxu0 %v101
    %167 = vmatpush.msra.mxu0 %v100
    %168 = vmatpush.msra.mxu0 %v99
    %169 = vmatpush.msra.mxu0 %v98
    %170 = vmatpush.msra.mxu0 %v97
    %171 = vmatpush.msra.mxu0 %v96
    %172 = vmatpush.msra.mxu0 %v95
    %173 = vmatpush.msra.mxu0 %v94
    %174 = vmatpush.msra.mxu0 %v93
    %175 = vmatpush.msra.mxu0 %v92
    %176 = vmatpush.msra.mxu0 %v91
    %177 = vmatpush.msra.mxu0 %v90
    %178 = vmatmul.f32.gmra.mxu0 %v71
    %v179 = vpop.f32.mrf.mxu0
    %v180 = vadd.f32 0.0, %v179
    %181 = vdwg.mxu0
    %182 = vmatpush.msra.mxu0 %v121
    %183 = vmatpush.msra.mxu0 %v120
    %184 = vmatpush.msra.mxu0 %v119
    %185 = vmatpush.msra.mxu0 %v118
    %186 = vmatpush.msra.mxu0 %v117
    %187 = vmatpush.msra.mxu0 %v116
    %188 = vmatpush.msra.mxu0 %v115
    %189 = vmatpush.msra.mxu0 %v114
    %190 = vmatpush.msra.mxu0 %v113
    %191 = vmatpush.msra.mxu0 %v112
    %192 = vmatpush.msra.mxu0 %v111
    %193 = vmatpush.msra.mxu0 %v110
    %194 = vmatpush.msra.mxu0 %v109
    %195 = vmatpush.msra.mxu0 %v108
    %196 = vmatpush.msra.mxu0 %v107
    %197 = vmatpush.msra.mxu0 %v106
    %198 = vmatmul.f32.gmra.mxu0 %v72
    %v199 = vpop.f32.mrf.mxu0
    %v200 = vadd.f32 0.0, %v199
    %201 = vdwg.mxu0
    %202 = vmatpush.msra.mxu0 %v137
    %203 = vmatpush.msra.mxu0 %v136
    %204 = vmatpush.msra.mxu0 %v135
    %205 = vmatpush.msra.mxu0 %v134
    %206 = vmatpush.msra.mxu0 %v133
    %207 = vmatpush.msra.mxu0 %v132
    %208 = vmatpush.msra.mxu0 %v131
    %209 = vmatpush.msra.mxu0 %v130
    %210 = vmatpush.msra.mxu0 %v129
    %211 = vmatpush.msra.mxu0 %v128
    %212 = vmatpush.msra.mxu0 %v127
    %213 = vmatpush.msra.mxu0 %v126
    %214 = vmatpush.msra.mxu0 %v125
    %215 = vmatpush.msra.mxu0 %v124
    %216 = vmatpush.msra.mxu0 %v123
    %217 = vmatpush.msra.mxu0 %v122
    %218 = vmatmul.f32.gmra.mxu0 %v73
    %v219 = vpop.f32.mrf.mxu0
    %v220 = vadd.f32 0.0, %v219
    %221 = vdwg.mxu0
    %v222 = vadd.f32 %v138, %v160
    %v223 = vadd.f32 %v139, %v180
    %v224 = vadd.f32 %v140, %v200
    %v225 = vadd.f32 %v141, %v220
    %226 = vst [vmem:[#allocation2] sm:$0xff] %v222
    %227 = vst [vmem:[#allocation2 + $0x8] sm:$0xff] %v223
    %228 = vst [vmem:[#allocation2 + $0x10] sm:$0xff] %v224
    %229 = vst [vmem:[#allocation2 + $0x18] sm:$0xff] %v225
    // Predicated region
    $region30: #{tpu_custom_call.1} parent=1 // pred_check
      %p230 = pneg %p62
    $region31: #{tpu_custom_call.1} parent=1 // pred_check_branch
      %232 = sbr.rel (%p230) target = $region33
    $region32: #{tpu_custom_call.1} parent=1 // pred_region
      %v233 = vld [vmem:[#allocation2] sm:$0xff]
      %v234 = vld [vmem:[#allocation2 + $0x8] sm:$0xff]
      %v235 = vld [vmem:[#allocation2 + $0x10] sm:$0xff]
      %v236 = vld [vmem:[#allocation2 + $0x18] sm:$0xff]
      %v237 = vld [vmem:[#allocation8] sm:$0x1]
      %v238 = vld [vmem:[#allocation8 + $0x1] sm:$0x1]
      %v239 = vld [vmem:[#allocation8 + $0x2] sm:$0x1]
      %v240 = vld [vmem:[#allocation8 + $0x3] sm:$0x1]
      %v245 = vperm.slane %v237, 0
      %v246 = vperm.slane %v238, 0
      %v247 = vperm.slane %v239, 0
      %v248 = vperm.slane %v240, 0
      %v253 = vadd.f32 %v233, %v245
      %v254 = vadd.f32 %v234, %v246
      %v255 = vadd.f32 %v235, %v247
      %v256 = vadd.f32 %v236, %v248
      %257 = vst [vmem:[#allocation9] sm:$0xff] %v253
      %258 = vst [vmem:[#allocation9 + $0x8] sm:$0xff] %v254
      %259 = vst [vmem:[#allocation9 + $0x10] sm:$0xff] %v255
      %260 = vst [vmem:[#allocation9 + $0x18] sm:$0xff] %v256
    $region33: #{tpu_custom_call.1} parent=1 // pred_fallthru
      _
    // Predicated region
    $region34: #{tpu_custom_call.1} parent=1 // pred_check
      _
    $region35: #{tpu_custom_call.1} parent=1 // pred_check_branch
      %262 = sbr.rel (0) target = $region37
    $region36: #{tpu_custom_call.1} parent=1 // pred_region
      %264 = vsyncadd [#allocation5], 0
      %s265 = sshll.u32 [#allocation9], 4
      %s266 = int_to_ptr.vmem [resolvable:$true] %s265
      %s267 = sshll.u32 %s3, 4
      %s268 = int_to_ptr.hbm [resolvable:$true] %s267
      %273 = dma.vmem_to_hbm [thread:$0]  %s266, 512, %s268, [#allocation5], 128, 128, 8
    $region37: #{tpu_custom_call.1} parent=1 // pred_fallthru
      _
    // Predicated region
    $region38: #{tpu_custom_call.1} parent=1 // pred_check
      _
    $region39: #{tpu_custom_call.1} parent=1 // pred_check_branch
      %275 = sbr.rel (0) target = $region41
    $region40: #{tpu_custom_call.1} parent=1 // pred_region
      %277 = dma.done [#allocation5], 512
    $region41: #{tpu_custom_call.1} parent=1 // pred_fallthru
      _
    %278 = vsyncpa [#allocation4], 1
    %279 = vsyncpa [#allocation7], 1
    %280 = vsyncpa [#allocation5], 1

</llo_original>
